<compile_context>
chip_gen: v6e
topology: v6e:2x2x1
jax: 0.10.0
libtpu: 0.0.40
codegen_flags: <defaults>
</compile_context>

<pallas_src>
import functools
from typing import Any, NamedTuple

import jax
import jax.numpy as jnp
from jax.experimental import pallas as pl
from jax.experimental.pallas import tpu as pltpu


def _round_up(x, m):
    return ((x + m - 1) // m) * m


# ---------------------------------------------------------------------------
# Hardware / feature probes (Python-level, cached, never run under a trace).
# ---------------------------------------------------------------------------
@functools.lru_cache(maxsize=1)
def _device_kind():
    try:
        return jax.devices()[0].device_kind.lower()
    except Exception:
        return ""


@functools.lru_cache(maxsize=1)
def _vmem_capacity_bytes():
    try:
        return int(pltpu.get_tpu_info().vmem_capacity_bytes)
    except Exception:
        pass
    kind = _device_kind()
    if "v5" in kind or "v6" in kind:
        return 128 << 20
    return 64 << 20            # v7x per-TC VMEM; also the safe default for unknown gens


@functools.lru_cache(maxsize=1)
def _tm_target():
    kind = _device_kind()
    if "v6" in kind:
        return 1024            # ~918 TF/s / ~1.35 TB/s  -> ridge ~680 rows
    return 512                 # v5e (~240) and v7x per-TC (~310) ridge points


@functools.lru_cache(maxsize=None)
def _pipeline_mode_supported(n):
    """Whether pl.Buffered(n) in BlockSpec.pipeline_mode compiles on this stack."""
    try:
        def _probe(x_ref, o_ref):
            o_ref[...] = x_ref[...] + 1.0

        x = jnp.zeros((8, 128), jnp.float32)
        out = pl.pallas_call(
            _probe,
            out_shape=jax.ShapeDtypeStruct((8, 128), jnp.float32),
            grid=(4,),
            in_specs=[pl.BlockSpec((8, 128), lambda i: (0, 0),
                                   pipeline_mode=pl.Buffered(n))],
            out_specs=pl.BlockSpec((8, 128), lambda i: (0, 0)),
        )(x)
        jax.block_until_ready(out)
        return True
    except Exception:
        return False


# ---------------------------------------------------------------------------
# Tile selection / VMEM footprint models.
# ---------------------------------------------------------------------------
def _choose_tm(M, target):
    """Row tile near the per-generation ridge point, minimal M padding, and
    >= 2 grid steps when M allows (so both v7x TensorCores get work)."""
    M8 = _round_up(max(M, 1), 8)
    if M8 <= target:
        if M8 < 16:
            return M8
        half = (M8 // 2) // 8 * 8
        return max(8, half)
    # Pick the tile in [target/2, target] (multiples of 64) with least padding;
    # ties favour the larger tile.  Avoids the full-tensor pad in common cases.
    best_t, best_pad = target, _round_up(M, target) - M
    t = target - 64
    lo = max(64, target // 2)
    while t >= lo and best_pad > 0:
        pad = _round_up(M, t) - M
        if pad < best_pad:
            best_t, best_pad = t, pad
        t -= 64
    return best_t


def _resident_vmem_bytes(C, H, tm, isz, osz, wbufs):
    weights = wbufs * 2 * C * H * isz              # W1 (C,H) + W2 (H,C)
    biases = wbufs * (H + C) * 4
    act_tiles = 2 * tm * C * (isz + osz)           # double-buffered x / out tiles
    temps = tm * H * (4 + isz) + tm * C * 4        # f32 h + bf16 h copy + f32 out
    return weights + biases + act_tiles + temps


def _htiled_vmem_bytes(C, th, tm, isz, osz, wbufs):
    slabs = wbufs * 2 * C * th * isz               # W1[:, th] + W2[th, :]
    biases = 2 * th * 4 + 2 * C * 4                # b1 slab (dbl-buffered) + b2
    act_tiles = 2 * tm * C * (isz + osz)           # x / out tiles
    acc = tm * C * 4                               # f32 accumulator scratch
    temps = tm * th * (4 + isz)                    # f32 partial h + bf16 copy
    return slabs + biases + act_tiles + acc + temps


def _choose_th(C, H, tm, isz, osz, budget, wbufs):
    Hp128 = _round_up(H, 128)
    largest_fit = None
    for cand in range(min(Hp128, 4096), 127, -128):
        if _htiled_vmem_bytes(C, cand, tm, isz, osz, wbufs) > budget:
            continue
        if Hp128 % cand == 0:
            return cand, Hp128                     # exact divisor: no H padding
        if largest_fit is None:
            largest_fit = cand
    th = largest_fit if largest_fit is not None else 128
    return th, _round_up(H, th)                    # fallback: zero-pad H


def _clamp_limit(limit, capacity):
    return int(min(max(limit, 32 << 20), int(capacity * 0.9)))


_HEADROOM = 6 << 20


# ---------------------------------------------------------------------------
# Kernel 1: weights fully resident in VMEM (small / medium C, H).
# ---------------------------------------------------------------------------
def ffn_resident_kernel(x_ref, w1_ref, b1_ref, w2_ref, b2_ref, o_ref):
    # x_ref: (tm, C) bf16, w1_ref: (C, H) bf16, b1_ref: (1, H) f32,
    # w2_ref: (H, C) bf16, b2_ref: (1, C) f32
    x = x_ref[...]
    h = jnp.dot(x, w1_ref[...], preferred_element_type=jnp.float32) + b1_ref[...]
    h = jnp.maximum(h, 0.0)                    # ReLU in f32 on the VPU
    h = h.astype(w2_ref.dtype)                 # single cast before 2nd matmul
    out = jnp.dot(h, w2_ref[...], preferred_element_type=jnp.float32) + b2_ref[...]
    o_ref[...] = out.astype(o_ref.dtype)


# ---------------------------------------------------------------------------
# Kernel 2: hidden (H) axis tiled with a resident f32 accumulator (GPT-scale C).
# ---------------------------------------------------------------------------
def ffn_htiled_kernel(x_ref, w1_ref, b1_ref, w2_ref, b2_ref, o_ref, acc_ref):
    k = pl.program_id(1)

    @pl.when(k == 0)
    def _():
        acc_ref[...] = jnp.zeros_like(acc_ref)

    x = x_ref[...]
    # h[:, k-slab] = ReLU(x @ W1[:, k-slab] + b1[k-slab])
    h = jnp.dot(x, w1_ref[...], preferred_element_type=jnp.float32) + b1_ref[...]
    h = jnp.maximum(h, 0.0).astype(w2_ref.dtype)
    # Partial contribution of this hidden slab to the full output.
    acc_ref[...] += jnp.dot(h, w2_ref[...], preferred_element_type=jnp.float32)

    @pl.when(k == pl.num_programs(1) - 1)
    def _():
        o_ref[...] = (acc_ref[...] + b2_ref[...]).astype(o_ref.dtype)


# ---------------------------------------------------------------------------
# Static configuration + jitted implementation.
# ---------------------------------------------------------------------------
class _FFNConfig(NamedTuple):
    tm: int
    th: int            # 0 => resident-weight path
    Mp: int
    Hp: int
    vmem_limit: int
    w_buffers: int     # resident path: 1|2 weight copies; H-tiled: slab buffer depth
    compute_dtype: Any


@functools.partial(jax.jit, static_argnames=("cfg",))
def _ffn_impl(x, w1, b1, w2, b2, cfg):
    B, T, C = x.shape
    H = w1.shape[1]
    M = B * T
    out_dtype = x.dtype
    cdt = cfg.compute_dtype
    isz = jnp.dtype(cdt).itemsize
    osz = jnp.dtype(out_dtype).itemsize
    tm, th, Mp, Hp = cfg.tm, cfg.th, cfg.Mp, cfg.Hp

    # bf16 MXU compute, f32 accumulation; biases stay f32 and are added to the
    # f32 accumulator (v5e's VPU is f32-only, the MXU takes bf16 on all gens).
    xc = x.reshape(M, C).astype(cdt)
    w1c = w1.astype(cdt)
    w2c = w2.astype(cdt)
    b1f = b1.reshape(1, H).astype(jnp.float32)
    b2f = b2.reshape(1, C).astype(jnp.float32)

    if Mp != M:            # rare: tm is chosen to divide M when possible
        xc = jnp.pad(xc, ((0, Mp - M), (0, 0)))
    if Hp != H:            # zero-padded hidden units contribute exactly 0
        w1c = jnp.pad(w1c, ((0, 0), (0, Hp - H)))
        b1f = jnp.pad(b1f, ((0, 0), (0, Hp - H)))
        w2c = jnp.pad(w2c, ((0, Hp - H), (0, 0)))

    n_mtiles = Mp // tm
    w_bytes = (w1c.size + w2c.size) * isz + b1f.size * 4
    weight_reads = w_bytes if th == 0 else n_mtiles * w_bytes   # slabs re-streamed per M-tile
    cost = pl.CostEstimate(
        flops=4 * M * C * H,
        transcendentals=0,
        bytes_accessed=int(xc.size * isz + weight_reads + b2f.size * 4 + Mp * C * osz),
    )

    if th == 0:
        # ------------------- resident-weight path --------------------------
        res_mode = {"pipeline_mode": pl.Buffered(1)} if cfg.w_buffers == 1 else {}
        out2d = pl.pallas_call(
            ffn_resident_kernel,
            out_shape=jax.ShapeDtypeStruct((Mp, C), out_dtype),
            grid_spec=pltpu.PrefetchScalarGridSpec(
                num_scalar_prefetch=0,
                grid=(Mp // tm,),
                in_specs=[
                    pl.BlockSpec((tm, C), lambda i: (i, 0)),              # x tile
                    pl.BlockSpec((C, Hp), lambda i: (0, 0), **res_mode),  # W1 (resident)
                    pl.BlockSpec((1, Hp), lambda i: (0, 0), **res_mode),  # b1 (f32)
                    pl.BlockSpec((Hp, C), lambda i: (0, 0), **res_mode),  # W2 (resident)
                    pl.BlockSpec((1, C), lambda i: (0, 0), **res_mode),   # b2 (f32)
                ],
                out_specs=pl.BlockSpec((tm, C), lambda i: (i, 0)),
            ),
            compiler_params=pltpu.CompilerParams(
                dimension_semantics=("parallel",),
                vmem_limit_bytes=cfg.vmem_limit),
            cost_estimate=cost,
        )(xc, w1c, b1f, w2c, b2f)
    else:
        # ------------------- H-tiled path (f32 accumulator) ----------------
        slab_mode = ({"pipeline_mode": pl.Buffered(cfg.w_buffers)}
                     if cfg.w_buffers != 2 else {})
        out2d = pl.pallas_call(
            ffn_htiled_kernel,
            out_shape=jax.ShapeDtypeStruct((Mp, C), out_dtype),
            grid_spec=pltpu.PrefetchScalarGridSpec(
                num_scalar_prefetch=0,
                grid=(Mp // tm, Hp // th),
                in_specs=[
                    pl.BlockSpec((tm, C), lambda i, k: (i, 0)),                # x tile
                    pl.BlockSpec((C, th), lambda i, k: (0, k), **slab_mode),   # W1 column slab
                    pl.BlockSpec((1, th), lambda i, k: (0, k)),                # b1 slab
                    pl.BlockSpec((th, C), lambda i, k: (k, 0), **slab_mode),   # W2 row slab
                    pl.BlockSpec((1, C), lambda i, k: (0, 0)),                 # b2
                ],
                out_specs=pl.BlockSpec((tm, C), lambda i, k: (i, 0)),
                scratch_shapes=[pltpu.VMEM((tm, C), jnp.float32)],
            ),
            compiler_params=pltpu.CompilerParams(
                dimension_semantics=("parallel", "arbitrary"),
                vmem_limit_bytes=cfg.vmem_limit),
            cost_estimate=cost,
        )(xc, w1c, b1f, w2c, b2f)

    return out2d[:M].reshape(B, T, C)


# ---------------------------------------------------------------------------
# Public wrapper: picks the path and tiles from static shapes + device info.
# ---------------------------------------------------------------------------
def feed_forward(x, w1, b1, w2, b2, *, tm=None, th=None, compute_dtype=jnp.bfloat16):
    """x: (B, T, C); w1: (C, H), b1: (1, H), w2: (H, C), b2: (1, C). Returns (B, T, C)."""
    B, T, C = x.shape
    H = w1.shape[1]
    M = B * T
    isz = jnp.dtype(compute_dtype).itemsize
    osz = jnp.dtype(x.dtype).itemsize

    capacity = _vmem_capacity_bytes()
    budget = int(capacity * 0.75)          # generation-aware residency/tiling budget

    if tm is None:
        tm = _choose_tm(M, _tm_target())
    tm = max(8, min(tm, _round_up(M, 8)))
    Mp = _round_up(M, tm)

    res_bufs = 1 if _pipeline_mode_supported(1) else 2
    resident_bytes = _resident_vmem_bytes(C, H, tm, isz, osz, res_bufs)

    if th is None and resident_bytes + _HEADROOM <= budget:
        cfg = _FFNConfig(
            tm=tm, th=0, Mp=Mp, Hp=H,
            vmem_limit=_clamp_limit(resident_bytes + _HEADROOM, capacity),
            w_buffers=res_bufs, compute_dtype=compute_dtype)
    else:
        slab_bufs = 2
        if th is None:
            th, Hp = _choose_th(C, H, tm, isz, osz, budget - _HEADROOM, slab_bufs)
        else:
            Hp = _round_up(H, th)
        # v6e (128 MiB VMEM): third weight-slab buffer hides DMA jitter when it fits.
        if ("v6" in _device_kind() and Hp // th >= 3 and _pipeline_mode_supported(3)
                and _htiled_vmem_bytes(C, th, tm, isz, osz, 3) + _HEADROOM <= budget):
            slab_bufs = 3
        cfg = _FFNConfig(
            tm=tm, th=th, Mp=Mp, Hp=Hp,
            vmem_limit=_clamp_limit(
                _htiled_vmem_bytes(C, th, tm, isz, osz, slab_bufs) + _HEADROOM, capacity),
            w_buffers=slab_bufs, compute_dtype=compute_dtype)

    return _ffn_impl(x, w1, b1, w2, b2, cfg)


def init_params(key, n_embd):
    """PyTorch nn.Linear default init: U(-1/sqrt(fan_in), 1/sqrt(fan_in))."""
    hidden = 4 * n_embd
    k1, k2, k3, k4 = jax.random.split(key, 4)
    bound1 = 1.0 / jnp.sqrt(n_embd)
    bound2 = 1.0 / jnp.sqrt(hidden)
    # Stored as (in, out) so the kernel computes x @ W (== torch's x @ W.T).
    w1 = jax.random.uniform(k1, (n_embd, hidden), jnp.float32, -bound1, bound1)
    b1 = jax.random.uniform(k2, (1, hidden), jnp.float32, -bound1, bound1)
    w2 = jax.random.uniform(k3, (hidden, n_embd), jnp.float32, -bound2, bound2)
    b2 = jax.random.uniform(k4, (1, n_embd), jnp.float32, -bound2, bound2)
    return w1, b1, w2, b2


def _ref_ffn(x, w1, b1, w2, b2):
    """Pure-JAX reference mirroring the kernel's mixed precision (bf16 MXU, f32 acc)."""
    B, T, C = x.shape
    xb = x.reshape(-1, C).astype(jnp.bfloat16)
    h = jnp.dot(xb, w1.astype(jnp.bfloat16), preferred_element_type=jnp.float32)
    h = jnp.maximum(h + b1.astype(jnp.float32), 0.0).astype(jnp.bfloat16)
    out = jnp.dot(h, w2.astype(jnp.bfloat16), preferred_element_type=jnp.float32)
    out = out + b2.astype(jnp.float32)
    return out.reshape(B, T, C).astype(x.dtype)


if __name__ == "__main__":
    key = jax.random.PRNGKey(0)

    # --- test 1: small shapes (resident-weight path) ------------------------
    # Note: n_embd=32 is lane-narrow (masked stores); real configs should keep
    # n_embd a multiple of 128 for lane-dense output writes.
    B, T, n_embd = 2, 8, 32
    kx, kp, kx2, kp2 = jax.random.split(key, 4)
    x = jax.random.normal(kx, (B, T, n_embd), jnp.float32)
    w1, b1, w2, b2 = init_params(kp, n_embd)

    out = jax.block_until_ready(feed_forward(x, w1, b1, w2, b2))
    ref = _ref_ffn(x, w1, b1, w2, b2)
    assert out.shape == (B, T, n_embd)
    assert jnp.allclose(out, ref, atol=1e-2, rtol=1e-2)

    # --- test 2: exercise the H-tiled accumulator path ----------------------
    n_embd2 = 128                      # H = 512, th = 256 -> 2 contraction steps
    x2 = jax.random.normal(kx2, (B, T, n_embd2), jnp.float32)
    w1b, b1b, w2b, b2b = init_params(kp2, n_embd2)

    out2 = jax.block_until_ready(feed_forward(x2, w1b, b1b, w2b, b2b, th=256))
    ref2 = _ref_ffn(x2, w1b, b1b, w2b, b2b)
    assert out2.shape == (B, T, n_embd2)
    assert jnp.allclose(out2, ref2, atol=1e-2, rtol=1e-2)

    print("KERNEL_OK")
</pallas_src>

<mosaic_0001>
module attributes {stable_mosaic.version = 11 : i64} {
  func.func @_probe(%arg0: i32, %arg1: memref<8x128xf32, #tpu.memory_space<vmem>>, %arg2: memref<8x128xf32, #tpu.memory_space<vmem>>) attributes {dimension_semantics = [#tpu.dimension_semantics<arbitrary>], iteration_bounds = array<i64: 4>, scalar_prefetch = 0 : i64, scratch_operands = 0 : i64, tpu.core_type = #tpu.core_type<tc>, window_params = [{pipeline_mode = #tpu.pipeline_mode<synchronous>, transform_indices = @transform_0, window_bounds = array<i64: 8, 128>}, {pipeline_mode = #tpu.pipeline_mode<synchronous>, transform_indices = @transform_1, window_bounds = array<i64: 8, 128>}]} {
    %c0 = arith.constant 0 : index
    %c0_0 = arith.constant 0 : index
    %0 = vector.load %arg1[%c0, %c0_0] : memref<8x128xf32, #tpu.memory_space<vmem>>, vector<8x128xf32>
    %cst = arith.constant 1.000000e+00 : f32
    %1 = vector.broadcast %cst : f32 to vector<8x128xf32>
    %2 = arith.addf %0, %1 : vector<8x128xf32>
    %c0_1 = arith.constant 0 : index
    %c0_2 = arith.constant 0 : index
    %3 = vector.load %arg2[%c0_1, %c0_2] : memref<8x128xf32, #tpu.memory_space<vmem>>, vector<8x128xf32>
    tpu.vector_store %arg2[%c0_1, %c0_2], %2 {strides = array<i32>} : memref<8x128xf32, #tpu.memory_space<vmem>>, vector<8x128xf32>,
    return
  }
  func.func @transform_0(%arg0: i32) -> (i32, i32) {
    %c0_i32 = arith.constant 0 : i32
    %c0_i32_0 = arith.constant 0 : i32
    %c0_i32_1 = arith.constant 0 : i32
    return %c0_i32, %c0_i32_0 : i32, i32
  }
  func.func @transform_1(%arg0: i32) -> (i32, i32) {
    %c0_i32 = arith.constant 0 : i32
    %c0_i32_0 = arith.constant 0 : i32
    %c0_i32_1 = arith.constant 0 : i32
    return %c0_i32, %c0_i32_0 : i32, i32
  }
}

module attributes {stable_mosaic.version = 11 : i64} {
  func.func @ffn_resident_kernel(%arg0: i32, %arg1: memref<8x32xbf16, #tpu.memory_space<vmem>>, %arg2: memref<32x128xbf16, #tpu.memory_space<vmem>>, %arg3: memref<1x128xf32, #tpu.memory_space<vmem>>, %arg4: memref<128x32xbf16, #tpu.memory_space<vmem>>, %arg5: memref<1x32xf32, #tpu.memory_space<vmem>>, %arg6: memref<8x32xf32, #tpu.memory_space<vmem>>) attributes {dimension_semantics = [#tpu.dimension_semantics<parallel>], iteration_bounds = array<i64: 2>, scalar_prefetch = 0 : i64, scratch_operands = 0 : i64, tpu.core_type = #tpu.core_type<tc>, window_params = [{transform_indices = @transform_0, window_bounds = array<i64: 8, 32>}, {pipeline_mode = #tpu.pipeline_mode<synchronous>, transform_indices = @transform_1, window_bounds = array<i64: 32, 128>}, {pipeline_mode = #tpu.pipeline_mode<synchronous>, transform_indices = @transform_2, window_bounds = array<i64: 1, 128>}, {pipeline_mode = #tpu.pipeline_mode<synchronous>, transform_indices = @transform_3, window_bounds = array<i64: 128, 32>}, {pipeline_mode = #tpu.pipeline_mode<synchronous>, transform_indices = @transform_4, window_bounds = array<i64: 1, 32>}, {transform_indices = @transform_5, window_bounds = array<i64: 8, 32>}]} {
    %c0 = arith.constant 0 : index
    %c0_0 = arith.constant 0 : index
    %0 = vector.load %arg1[%c0, %c0_0] : memref<8x32xbf16, #tpu.memory_space<vmem>>, vector<8x32xbf16>
    %c0_1 = arith.constant 0 : index
    %c0_2 = arith.constant 0 : index
    %1 = vector.load %arg2[%c0_1, %c0_2] : memref<32x128xbf16, #tpu.memory_space<vmem>>, vector<32x128xbf16>
    %cst = arith.constant dense<0.000000e+00> : vector<8x128xf32>
    %2 = tpu.matmul %0, %1, %cst {dimension_numbers = #tpu.dot_dimension_numbers<[1], [0], [0], [1], [0, 0, 1, 1], [], []>} : vector<8x32xbf16>, vector<32x128xbf16>, vector<8x128xf32> -> vector<8x128xf32>
    %c0_3 = arith.constant 0 : index
    %c0_4 = arith.constant 0 : index
    %3 = vector.load %arg3[%c0_3, %c0_4] : memref<1x128xf32, #tpu.memory_space<vmem>>, vector<1x128xf32>
    %4 = vector.broadcast %3 : vector<1x128xf32> to vector<8x128xf32>
    %5 = arith.addf %2, %4 : vector<8x128xf32>
    %cst_5 = arith.constant 0.000000e+00 : f32
    %6 = vector.broadcast %cst_5 : f32 to vector<8x128xf32>
    %7 = arith.maximumf %5, %6 : vector<8x128xf32>
    %8 = arith.truncf %7 : vector<8x128xf32> to vector<8x128xbf16>
    %c0_6 = arith.constant 0 : index
    %c0_7 = arith.constant 0 : index
    %9 = vector.load %arg4[%c0_6, %c0_7] : memref<128x32xbf16, #tpu.memory_space<vmem>>, vector<128x32xbf16>
    %cst_8 = arith.constant dense<0.000000e+00> : vector<8x32xf32>
    %10 = tpu.matmul %8, %9, %cst_8 {dimension_numbers = #tpu.dot_dimension_numbers<[1], [0], [0], [1], [0, 0, 1, 1], [], []>} : vector<8x128xbf16>, vector<128x32xbf16>, vector<8x32xf32> -> vector<8x32xf32>
    %c0_9 = arith.constant 0 : index
    %c0_10 = arith.constant 0 : index
    %11 = vector.load %arg5[%c0_9, %c0_10] : memref<1x32xf32, #tpu.memory_space<vmem>>, vector<1x32xf32>
    %12 = vector.broadcast %11 : vector<1x32xf32> to vector<8x32xf32>
    %13 = arith.addf %10, %12 : vector<8x32xf32>
    %c0_11 = arith.constant 0 : index
    %c0_12 = arith.constant 0 : index
    %14 = vector.load %arg6[%c0_11, %c0_12] : memref<8x32xf32, #tpu.memory_space<vmem>>, vector<8x32xf32>
    tpu.vector_store %arg6[%c0_11, %c0_12], %13 {strides = array<i32>} : memref<8x32xf32, #tpu.memory_space<vmem>>, vector<8x32xf32>,
    return
  }
  func.func @transform_0(%arg0: i32) -> (i32, i32) {
    %c0_i32 = arith.constant 0 : i32
    %c0_i32_0 = arith.constant 0 : i32
    return %arg0, %c0_i32 : i32, i32
  }
  func.func @transform_1(%arg0: i32) -> (i32, i32) {
    %c0_i32 = arith.constant 0 : i32
    %c0_i32_0 = arith.constant 0 : i32
    %c0_i32_1 = arith.constant 0 : i32
    return %c0_i32, %c0_i32_0 : i32, i32
  }
  func.func @transform_2(%arg0: i32) -> (i32, i32) {
    %c0_i32 = arith.constant 0 : i32
    %c0_i32_0 = arith.constant 0 : i32
    %c0_i32_1 = arith.constant 0 : i32
    return %c0_i32, %c0_i32_0 : i32, i32
  }
  func.func @transform_3(%arg0: i32) -> (i32, i32) {
    %c0_i32 = arith.constant 0 : i32
    %c0_i32_0 = arith.constant 0 : i32
    %c0_i32_1 = arith.constant 0 : i32
    return %c0_i32, %c0_i32_0 : i32, i32
  }
  func.func @transform_4(%arg0: i32) -> (i32, i32) {
    %c0_i32 = arith.constant 0 : i32
    %c0_i32_0 = arith.constant 0 : i32
    %c0_i32_1 = arith.constant 0 : i32
    return %c0_i32, %c0_i32_0 : i32, i32
  }
  func.func @transform_5(%arg0: i32) -> (i32, i32) {
    %c0_i32 = arith.constant 0 : i32
    %c0_i32_0 = arith.constant 0 : i32
    return %arg0, %c0_i32 : i32, i32
  }
}

</mosaic_0001>

<llo_original>
// kernel: tpu_custom_call.1
$region0: #{tpu_custom_call.1}
  #allocation0 [shape = 'u32[]', space=smem, size = 0x4, offset = 0x4, fixed_abs, tag = 'smem constant byte address 0x4 - core index']
  #allocation1 [shape = 'u32[144,128]{1,0:T(1,128)}', space=vmem, size = 0x12000, scoped, tag = 'internal scratch']
  %s0 = inlined_call_operand.hbm [shape: f32[8,128], index: 0, kind: input, shape index: {}]
  %s1 = inlined_call_operand.hbm [shape: f32[8,128], index: 1, kind: output, shape index: {}]
  %s2 = sld [smem:[#allocation0]]
  $region41: #{tpu_custom_call.1} parent=0
    _
  %s4 = ssub.s32 1, %s2
  %s5 = scalar_select 0, %s4, %s2
  $region1: #{tpu_custom_call.1} parent=0
    #allocation2 [shape = 'u8[4096]{0}', space=vmem, size = 0x1000, scoped, tag = 'input window, operand 0, single buffered']
    #allocation3 [shape = 's32[2]{0}', space=sflag, size = 0x8, scoped, tag = 'scoped memory for tpu_custom_call.1']
    #allocation4 [shape = 's32[2]{0}', space=sflag, size = 0x8, scoped, tag = 'scoped memory for tpu_custom_call.1']
    #allocation5 [shape = 'u8[4096]{0}', space=vmem, size = 0x1000, scoped, tag = 'output window, operand 0, single buffered']
    %6 = vsyncpa [#allocation3], 0
    %7 = vsyncpa [#allocation4], 0
    loop: start=0, step=1, limit=6
    $region2: #{tpu_custom_call.1} parent=1 // loop_pre_header
      _
    $region3: #{tpu_custom_call.1} parent=1 // loop_header
      %s9 = sphi 0, %s13
      %p10 = scmp.ge.s32.totalorder %s9, 6
      %s17 = sphi 0, %s17
      %s19 = sphi 0, %s17
      %s20 = sphi 0, %s19
      %s34 = sphi 0, %s20
      %s38 = sphi 0, %s38
      %s40 = sphi 0, %s38
      %s41 = sphi 0, %s40
      %s55 = sphi 0, %s41
    $region4: #{tpu_custom_call.1} parent=1 // loop_header_branch
      %12 = sbr.rel (%p10) target = $region8
    $region5: #{tpu_custom_call.1} parent=1 // loop_body
      %s14 = ssub.s32 %s9, 1
      %s15 = ssub.s32 %s9, 2
      %s16 = sadd.s32 %s9, 1
      %s18 = sadd.s32 %s17, 1
      %p21 = scmp.eq.s32.totalorder %s9, 3
      %p22 = scmp.ne.s32.totalorder %s17, %s19
      %p23 = scmp.eq.s32.totalorder %s9, 0
      %p24 = por %p22, %p23
      %p25 = scmp.ne.s32.totalorder %s17, %s19
      %p26 = scmp.eq.s32.totalorder %s14, 3
      %p27 = por %p25, %p26
      %p28 = scmp.ne.s32.totalorder %s19, %s20
      %p29 = scmp.eq.s32.totalorder %s14, 0
      %p30 = por %p28, %p29
      %p31 = scmp.ne.s32.totalorder %s19, %s20
      %p32 = scmp.eq.s32.totalorder %s15, 3
      %p33 = por %p31, %p32
      %p35 = scmp.ne.s32.totalorder %s20, %s34
      %p36 = scmp.eq.s32.totalorder %s15, 0
      %p37 = por %p35, %p36
      %s39 = sadd.s32 %s38, 1
      %p42 = scmp.eq.s32.totalorder %s9, 3
      %p43 = scmp.ne.s32.totalorder %s38, %s40
      %p44 = scmp.eq.s32.totalorder %s9, 0
      %p45 = por %p43, %p44
      %p46 = scmp.ne.s32.totalorder %s38, %s40
      %p47 = scmp.eq.s32.totalorder %s14, 3
      %p48 = por %p46, %p47
      %p49 = scmp.ne.s32.totalorder %s40, %s41
      %p50 = scmp.eq.s32.totalorder %s14, 0
      %p51 = por %p49, %p50
      %p52 = scmp.ne.s32.totalorder %s40, %s41
      %p53 = scmp.eq.s32.totalorder %s15, 3
      %p54 = por %p52, %p53
      %p56 = scmp.ne.s32.totalorder %s41, %s55
      %p57 = scmp.eq.s32.totalorder %s15, 0
      %p58 = por %p56, %p57
      %p59 = scmp.le.s32.totalorder 1, %s9
      %p60 = scmp.lt.s32.totalorder %s9, 5
      %p61 = pnand %p59, %p60
      %p62 = pneg %p61
      // Predicated region
      $region9: #{tpu_custom_call.1} parent=5 // pred_check
        _
      $region10: #{tpu_custom_call.1} parent=5 // pred_check_branch
        %64 = sbr.rel (%p61) target = $region12
      $region11: #{tpu_custom_call.1} parent=5 // pred_region
        %s65 = ssub.s32 %s9, 1
        // Predicated region
        $region13: #{tpu_custom_call.1} parent=11 // pred_check
          %p66 = pneg %p30
        $region14: #{tpu_custom_call.1} parent=11 // pred_check_branch
          %68 = sbr.rel (%p66) target = $region16
        $region15: #{tpu_custom_call.1} parent=11 // pred_region
          %s70 = ssub.s32 128, 128
          %71 = vsyncadd [#allocation3], %s70
          %s73 = sshll.u32 [#allocation2], 4
          %s74 = int_to_ptr.vmem [resolvable:$true] %s73
          %76 = dma.hbm_to_vmem [thread:$0]  %s0, 128, %s74, [#allocation3]
        $region16: #{tpu_custom_call.1} parent=11 // pred_fallthru
          _
      $region12: #{tpu_custom_call.1} parent=5 // pred_fallthru
        _
      %p77 = scmp.lt.s32.totalorder %s9, 4
      // Predicated region
      $region17: #{tpu_custom_call.1} parent=5 // pred_check
        %p78 = pneg %p77
      $region18: #{tpu_custom_call.1} parent=5 // pred_check_branch
        %80 = sbr.rel (%p78) target = $region20
      $region19: #{tpu_custom_call.1} parent=5 // pred_region
        _
      $region20: #{tpu_custom_call.1} parent=5 // pred_fallthru
        _
      %p81 = scmp.le.s32.totalorder 1, %s9
      %p82 = scmp.lt.s32.totalorder %s9, 5
      %p83 = pnand %p81, %p82
      %p84 = pneg %p83
      // Predicated region
      $region21: #{tpu_custom_call.1} parent=5 // pred_check
        _
      $region22: #{tpu_custom_call.1} parent=5 // pred_check_branch
        %86 = sbr.rel (%p83) target = $region24
      $region23: #{tpu_custom_call.1} parent=5 // pred_region
        %s87 = ssub.s32 %s9, 1
        // Predicated region
        $region25: #{tpu_custom_call.1} parent=23 // pred_check
          %p88 = pneg %p30
        $region26: #{tpu_custom_call.1} parent=23 // pred_check_branch
          %90 = sbr.rel (%p88) target = $region28
        $region27: #{tpu_custom_call.1} parent=23 // pred_region
          %91 = dma.done [#allocation3], 128
        $region28: #{tpu_custom_call.1} parent=23 // pred_fallthru
          _
        %p92 = pneg %p30
        %p93 = pneg %p27
        %p94 = pneg %p51
        %p95 = pneg %p48
        %v96 = vld [vmem:[#allocation2] sm:$0xff]
        %v97 = vadd.f32 %v96, 1.0
        %98 = vst [vmem:[#allocation5] sm:$0xff] %v97
        // Predicated region
        $region29: #{tpu_custom_call.1} parent=23 // pred_check
          %p99 = pneg %p48
        $region30: #{tpu_custom_call.1} parent=23 // pred_check_branch
          %101 = sbr.rel (%p99) target = $region32
        $region31: #{tpu_custom_call.1} parent=23 // pred_region
          %s103 = ssub.s32 128, 128
          %104 = vsyncadd [#allocation4], %s103
          %s106 = sshll.u32 [#allocation5], 4
          %s107 = int_to_ptr.vmem [resolvable:$true] %s106
          %109 = dma.vmem_to_hbm [thread:$0]  %s107, 128, %s1, [#allocation4]
        $region32: #{tpu_custom_call.1} parent=23 // pred_fallthru
          _
        // Predicated region
        $region33: #{tpu_custom_call.1} parent=23 // pred_check
          %p110 = pneg %p48
        $region34: #{tpu_custom_call.1} parent=23 // pred_check_branch
          %112 = sbr.rel (%p110) target = $region36
        $region35: #{tpu_custom_call.1} parent=23 // pred_region
          %113 = dma.done [#allocation4], 128
        $region36: #{tpu_custom_call.1} parent=23 // pred_fallthru
          _
      $region24: #{tpu_custom_call.1} parent=5 // pred_fallthru
        _
      %p114 = scmp.le.s32.totalorder 2, %s9
      // Predicated region
      $region37: #{tpu_custom_call.1} parent=5 // pred_check
        %p115 = pneg %p114
      $region38: #{tpu_custom_call.1} parent=5 // pred_check_branch
        %117 = sbr.rel (%p115) target = $region40
      $region39: #{tpu_custom_call.1} parent=5 // pred_region
        %s118 = ssub.s32 %s9, 2
      $region40: #{tpu_custom_call.1} parent=5 // pred_fallthru
        _
    $region6: #{tpu_custom_call.1} parent=1 // loop_footer
      %s13 = sadd.s32 1, %s9
    $region7: #{tpu_custom_call.1} parent=1 // loop_footer_branch
      %8 = sbr.rel target = $region3
    $region8: #{tpu_custom_call.1} parent=1 // loop_exit
      _
    %119 = vsyncpa [#allocation3], 1
    %s120 = scalar_lea.sflag [#allocation3], 1
    %121 = vsyncpa %s120, 1
    %122 = vsyncpa [#allocation4], 1
    %s123 = scalar_lea.sflag [#allocation4], 1
    %124 = vsyncpa %s123, 1

// kernel: _ffn_impl.1
$region0: #{_ffn_impl.1}
  #allocation0 [shape = 'u32[]', space=smem, size = 0x4, offset = 0x4, fixed_abs, tag = 'smem constant byte address 0x4 - core index']
  #allocation1 [shape = 'u32[144,128]{1,0:T(1,128)}', space=vmem, size = 0x12000, scoped, tag = 'internal scratch']
  %s0 = inlined_call_operand.vmem [shape: bf16[16,32], index: 0, kind: input, shape index: {}]
  %s1 = inlined_call_operand.vmem [shape: bf16[32,128], index: 1, kind: input, shape index: {}]
  %s2 = inlined_call_operand.vmem [shape: f32[1,128], index: 2, kind: input, shape index: {}]
  %s3 = inlined_call_operand.vmem [shape: bf16[128,32], index: 3, kind: input, shape index: {}]
  %s4 = inlined_call_operand.vmem [shape: f32[1,32], index: 4, kind: input, shape index: {}]
  %s5 = inlined_call_operand.hbm [shape: f32[16,32], index: 5, kind: output, shape index: {}]
  %s6 = sld [smem:[#allocation0]]
  $region53: #{_ffn_impl.1} parent=0
    _
  %s8 = ssub.s32 1, %s6
  %s9 = scalar_select 0, %s8, %s6
  $region1: #{_ffn_impl.1} parent=0
    #allocation2 [shape = 'u8[8192]{0}', space=vmem, size = 0x2000, scoped, tag = 'output window, operand 0']
    #allocation3 [shape = 's32[2]{0}', space=sflag, size = 0x8, scoped, tag = 'scoped memory for _ffn_impl.1']
    %10 = vsyncpa [#allocation3], 0
    %s11 = scalar_lea.sflag [#allocation3], 1
    %12 = vsyncpa %s11, 0
    loop: start=0, step=1, limit=4
    $region2: #{_ffn_impl.1} parent=1 // loop_pre_header
      _
    $region3: #{_ffn_impl.1} parent=1 // loop_header
      %s14 = sphi 0, %s18
      %p15 = scmp.ge.s32.totalorder %s14, 4
      %s24 = sphi 0, %s26
      %s27 = sphi 0, %s24
      %s28 = sphi 0, %s27
      %s44 = sphi 0, %s28
      %s48 = sphi 0, %s48
      %s50 = sphi 0, %s48
      %s51 = sphi 0, %s50
      %s65 = sphi 0, %s51
      %s69 = sphi 0, %s69
      %s71 = sphi 0, %s69
      %s72 = sphi 0, %s71
      %s86 = sphi 0, %s72
      %s90 = sphi 0, %s90
      %s92 = sphi 0, %s90
      %s93 = sphi 0, %s92
      %s107 = sphi 0, %s93
      %s111 = sphi 0, %s111
      %s113 = sphi 0, %s111
      %s114 = sphi 0, %s113
      %s128 = sphi 0, %s114
      %s134 = sphi 0, %s136
      %s137 = sphi 0, %s134
      %s138 = sphi 0, %s137
      %s154 = sphi 0, %s138
    $region4: #{_ffn_impl.1} parent=1 // loop_header_branch
      %17 = sbr.rel (%p15) target = $region8
    $region5: #{_ffn_impl.1} parent=1 // loop_body
      %s19 = ssub.s32 %s14, 1
      %s20 = ssub.s32 %s14, 2
      %s21 = sadd.s32 %s14, 1
      %s22 = ssub.s32 %s14, %s21
      %p23 = scmp.eq.s32.totalorder %s22, 0
      %s25 = sadd.s32 %s24, 1
      %s26 = scalar_select %p23, %s24, %s25
      %p29 = pneg %p23
      %p30 = scmp.eq.s32.totalorder %s14, 1
      %p31 = por %p29, %p30
      %p32 = scmp.ne.s32.totalorder %s24, %s27
      %p33 = scmp.eq.s32.totalorder %s14, 0
      %p34 = por %p32, %p33
      %p35 = scmp.ne.s32.totalorder %s24, %s27
      %p36 = scmp.eq.s32.totalorder %s19, 1
      %p37 = por %p35, %p36
      %p38 = scmp.ne.s32.totalorder %s27, %s28
      %p39 = scmp.eq.s32.totalorder %s19, 0
      %p40 = por %p38, %p39
      %p41 = scmp.ne.s32.totalorder %s27, %s28
      %p42 = scmp.eq.s32.totalorder %s20, 1
      %p43 = por %p41, %p42
      %p45 = scmp.ne.s32.totalorder %s28, %s44
      %p46 = scmp.eq.s32.totalorder %s20, 0
      %p47 = por %p45, %p46
      %s49 = sadd.s32 %s48, 1
      %p52 = scmp.eq.s32.totalorder %s14, 1
      %p53 = scmp.ne.s32.totalorder %s48, %s50
      %p54 = scmp.eq.s32.totalorder %s14, 0
      %p55 = por %p53, %p54
      %p56 = scmp.ne.s32.totalorder %s48, %s50
      %p57 = scmp.eq.s32.totalorder %s19, 1
      %p58 = por %p56, %p57
      %p59 = scmp.ne.s32.totalorder %s50, %s51
      %p60 = scmp.eq.s32.totalorder %s19, 0
      %p61 = por %p59, %p60
      %p62 = scmp.ne.s32.totalorder %s50, %s51
      %p63 = scmp.eq.s32.totalorder %s20, 1
      %p64 = por %p62, %p63
      %p66 = scmp.ne.s32.totalorder %s51, %s65
      %p67 = scmp.eq.s32.totalorder %s20, 0
      %p68 = por %p66, %p67
      %s70 = sadd.s32 %s69, 1
      %p73 = scmp.eq.s32.totalorder %s14, 1
      %p74 = scmp.ne.s32.totalorder %s69, %s71
      %p75 = scmp.eq.s32.totalorder %s14, 0
      %p76 = por %p74, %p75
      %p77 = scmp.ne.s32.totalorder %s69, %s71
      %p78 = scmp.eq.s32.totalorder %s19, 1
      %p79 = por %p77, %p78
      %p80 = scmp.ne.s32.totalorder %s71, %s72
      %p81 = scmp.eq.s32.totalorder %s19, 0
      %p82 = por %p80, %p81
      %p83 = scmp.ne.s32.totalorder %s71, %s72
      %p84 = scmp.eq.s32.totalorder %s20, 1
      %p85 = por %p83, %p84
      %p87 = scmp.ne.s32.totalorder %s72, %s86
      %p88 = scmp.eq.s32.totalorder %s20, 0
      %p89 = por %p87, %p88
      %s91 = sadd.s32 %s90, 1
      %p94 = scmp.eq.s32.totalorder %s14, 1
      %p95 = scmp.ne.s32.totalorder %s90, %s92
      %p96 = scmp.eq.s32.totalorder %s14, 0
      %p97 = por %p95, %p96
      %p98 = scmp.ne.s32.totalorder %s90, %s92
      %p99 = scmp.eq.s32.totalorder %s19, 1
      %p100 = por %p98, %p99
      %p101 = scmp.ne.s32.totalorder %s92, %s93
      %p102 = scmp.eq.s32.totalorder %s19, 0
      %p103 = por %p101, %p102
      %p104 = scmp.ne.s32.totalorder %s92, %s93
      %p105 = scmp.eq.s32.totalorder %s20, 1
      %p106 = por %p104, %p105
      %p108 = scmp.ne.s32.totalorder %s93, %s107
      %p109 = scmp.eq.s32.totalorder %s20, 0
      %p110 = por %p108, %p109
      %s112 = sadd.s32 %s111, 1
      %p115 = scmp.eq.s32.totalorder %s14, 1
      %p116 = scmp.ne.s32.totalorder %s111, %s113
      %p117 = scmp.eq.s32.totalorder %s14, 0
      %p118 = por %p116, %p117
      %p119 = scmp.ne.s32.totalorder %s111, %s113
      %p120 = scmp.eq.s32.totalorder %s19, 1
      %p121 = por %p119, %p120
      %p122 = scmp.ne.s32.totalorder %s113, %s114
      %p123 = scmp.eq.s32.totalorder %s19, 0
      %p124 = por %p122, %p123
      %p125 = scmp.ne.s32.totalorder %s113, %s114
      %p126 = scmp.eq.s32.totalorder %s20, 1
      %p127 = por %p125, %p126
      %p129 = scmp.ne.s32.totalorder %s114, %s128
      %p130 = scmp.eq.s32.totalorder %s20, 0
      %p131 = por %p129, %p130
      %s132 = ssub.s32 %s14, %s21
      %p133 = scmp.eq.s32.totalorder %s132, 0
      %s135 = sadd.s32 %s134, 1
      %s136 = scalar_select %p133, %s134, %s135
      %p139 = pneg %p133
      %p140 = scmp.eq.s32.totalorder %s14, 1
      %p141 = por %p139, %p140
      %p142 = scmp.ne.s32.totalorder %s134, %s137
      %p143 = scmp.eq.s32.totalorder %s14, 0
      %p144 = por %p142, %p143
      %p145 = scmp.ne.s32.totalorder %s134, %s137
      %p146 = scmp.eq.s32.totalorder %s19, 1
      %p147 = por %p145, %p146
      %p148 = scmp.ne.s32.totalorder %s137, %s138
      %p149 = scmp.eq.s32.totalorder %s19, 0
      %p150 = por %p148, %p149
      %p151 = scmp.ne.s32.totalorder %s137, %s138
      %p152 = scmp.eq.s32.totalorder %s20, 1
      %p153 = por %p151, %p152
      %p155 = scmp.ne.s32.totalorder %s138, %s154
      %p156 = scmp.eq.s32.totalorder %s20, 0
      %p157 = por %p155, %p156
      %p158 = scmp.le.s32.totalorder 1, %s14
      %p159 = scmp.lt.s32.totalorder %s14, 3
      %p160 = pnand %p158, %p159
      %p161 = pneg %p160
      // Predicated region
      $region9: #{_ffn_impl.1} parent=5 // pred_check
        _
      $region10: #{_ffn_impl.1} parent=5 // pred_check_branch
        %163 = sbr.rel (%p160) target = $region12
      $region11: #{_ffn_impl.1} parent=5 // pred_region
        %s164 = ssub.s32 %s14, 1
        // Predicated region
        $region13: #{_ffn_impl.1} parent=11 // pred_check
          %p165 = pneg %p61
        $region14: #{_ffn_impl.1} parent=11 // pred_check_branch
          %167 = sbr.rel (%p165) target = $region16
        $region15: #{_ffn_impl.1} parent=11 // pred_region
          _
        $region16: #{_ffn_impl.1} parent=11 // pred_fallthru
          _
        // Predicated region
        $region17: #{_ffn_impl.1} parent=11 // pred_check
          %p168 = pneg %p82
        $region18: #{_ffn_impl.1} parent=11 // pred_check_branch
          %170 = sbr.rel (%p168) target = $region20
        $region19: #{_ffn_impl.1} parent=11 // pred_region
          _
        $region20: #{_ffn_impl.1} parent=11 // pred_fallthru
          _
        // Predicated region
        $region21: #{_ffn_impl.1} parent=11 // pred_check
          %p171 = pneg %p103
        $region22: #{_ffn_impl.1} parent=11 // pred_check_branch
          %173 = sbr.rel (%p171) target = $region24
        $region23: #{_ffn_impl.1} parent=11 // pred_region
          _
        $region24: #{_ffn_impl.1} parent=11 // pred_fallthru
          _
        // Predicated region
        $region25: #{_ffn_impl.1} parent=11 // pred_check
          %p174 = pneg %p124
        $region26: #{_ffn_impl.1} parent=11 // pred_check_branch
          %176 = sbr.rel (%p174) target = $region28
        $region27: #{_ffn_impl.1} parent=11 // pred_region
          _
        $region28: #{_ffn_impl.1} parent=11 // pred_fallthru
          _
      $region12: #{_ffn_impl.1} parent=5 // pred_fallthru
        _
      %p177 = scmp.lt.s32.totalorder %s14, 2
      // Predicated region
      $region29: #{_ffn_impl.1} parent=5 // pred_check
        %p178 = pneg %p177
      $region30: #{_ffn_impl.1} parent=5 // pred_check_branch
        %180 = sbr.rel (%p178) target = $region32
      $region31: #{_ffn_impl.1} parent=5 // pred_region
        // Predicated region
        $region33: #{_ffn_impl.1} parent=31 // pred_check
          %p181 = pneg %p34
        $region34: #{_ffn_impl.1} parent=31 // pred_check_branch
          %183 = sbr.rel (%p181) target = $region36
        $region35: #{_ffn_impl.1} parent=31 // pred_region
          %p184 = scmp.lt.s32.totalorder %s14, 1
          %s185 = scalar_select %p184, %s14, 1
          %s186 = smul.addr %s185, 4
          %s187 = scalar_lea.vmem %s0, %s186
        $region36: #{_ffn_impl.1} parent=31 // pred_fallthru
          _
      $region32: #{_ffn_impl.1} parent=5 // pred_fallthru
        _
      %p188 = scmp.le.s32.totalorder 1, %s14
      %p189 = scmp.lt.s32.totalorder %s14, 3
      %p190 = pnand %p188, %p189
      %p191 = pneg %p190
      // Predicated region
      $region37: #{_ffn_impl.1} parent=5 // pred_check
        _
      $region38: #{_ffn_impl.1} parent=5 // pred_check_branch
        %193 = sbr.rel (%p190) target = $region40
      $region39: #{_ffn_impl.1} parent=5 // pred_region
        %s194 = ssub.s32 %s14, 1
        %p195 = scmp.lt.s32.totalorder %s19, 1
        %s196 = scalar_select %p195, %s19, 1
        %s197 = smul.addr %s196, 4
        %s198 = scalar_lea.vmem %s0, %s197
        %p199 = pneg %p40
        %p200 = pneg %p37
        %p201 = pneg %p61
        %p202 = pneg %p58
        %p203 = pneg %p82
        %p204 = pneg %p79
        %p205 = pneg %p103
        %p206 = pneg %p100
        %p207 = pneg %p124
        %p208 = pneg %p121
        %p209 = pneg %p150
        %p210 = pneg %p147
        %s211 = sand.u32 %s137, 1
        %s212 = scalar_lea.sflag [#allocation3], %s211
        %s213 = sand.u32 %s137, 1
        %s214 = smul.addr %s213, 8
        %s215 = scalar_lea.vmem [#allocation2], %s214
        %p216 = scmp.lt.s32.totalorder %s19, 1
        %s217 = scalar_select %p216, %s19, 1
        %s218 = smul.addr %s217, 4
        %s219 = scalar_lea.vmem %s0, %s218
        %v221 = vld [vmem:[%s219] sm:$0xf]
        %v222 = vld [vmem:[%s1] sm:$0xf]
        %v223 = vld [vmem:[%s1 + $0x4] sm:$0xf]
        %v224 = vld [vmem:[%s1 + $0x8] sm:$0xf]
        %v225 = vld [vmem:[%s1 + $0xc] sm:$0xf]
        %v226 = vld [vmem:[%s2] sm:$0x1]
        %v228 = vlaneseq
        %v229 = vshrl.u32 %v228, 7
        %v230 = vsub.s32 0, %v229
        %v231 = vrot.slane %v226, %v230
        %v237 = vunpack.c.l.b16 %v222
        %v238 = vunpack.c.l.b16 %v223
        %v239 = vunpack.c.l.b16 %v224
        %v240 = vunpack.c.l.b16 %v225
        %v241 = vpack.c.b16 %v238, %v237
        %v242 = vpack.c.b16 %v240, %v239
        %vm245 = vcmask 261120
        %v247 = vsel %vm245, %v221, 0
        %249 = vmatprep.subr.bf16.mxu0 0
        %250 = vmatpush1.bf16.msra.mxu0 0
        %251 = vmatprep.subr.bf16.mxu0 0
        %252 = vmatpush1.bf16.msra.mxu0 0
        %253 = vmatprep.subr.bf16.mxu0 0
        %254 = vmatpush1.bf16.msra.mxu0 0
        %255 = vmatprep.subr.bf16.mxu0 0
        %256 = vmatpush1.bf16.msra.mxu0 0
        %257 = vmatprep.subr.bf16.mxu0 0
        %258 = vmatpush1.bf16.msra.mxu0 0
        %259 = vmatprep.subr.bf16.mxu0 0
        %260 = vmatpush1.bf16.msra.mxu0 0
        %261 = vmatprep.subr.bf16.mxu0 0
        %262 = vmatpush1.bf16.msra.mxu0 %v242
        %263 = vmatprep.subr.bf16.mxu0 0
        %264 = vmatpush1.bf16.msra.mxu0 %v241
        %265 = vmatprep.subr.bf16.mxu0 0
        %266 = vmatpush2.bf16.msra.mxu0 0
        %267 = vmatprep.subr.bf16.mxu0 0
        %268 = vmatpush2.bf16.msra.mxu0 0
        %269 = vmatprep.subr.bf16.mxu0 0
        %270 = vmatpush2.bf16.msra.mxu0 0
        %271 = vmatprep.subr.bf16.mxu0 0
        %272 = vmatpush2.bf16.msra.mxu0 0
        %273 = vmatprep.subr.bf16.mxu0 0
        %274 = vmatpush2.bf16.msra.mxu0 0
        %275 = vmatprep.subr.bf16.mxu0 0
        %276 = vmatpush2.bf16.msra.mxu0 0
        %277 = vmatprep.subr.bf16.mxu0 0
        %278 = vmatpush2.bf16.msra.mxu0 0
        %279 = vmatprep.subr.bf16.mxu0 0
        %280 = vmatpush2.bf16.msra.mxu0 0
        %281 = vmatprep.mubr.bf16.mxu0 0
        %282 = vmatmul.mubr.bf16.gmra.mxu0 %v247
        %v283 = vpop.f32.mrf.mxu0
        %v284 = vadd.f32 %v231, %v283
        %v285 = vpop.f32.mrf.mxu0
        %v286 = vpop.f32.mrf.mxu0
        %v287 = vpop.f32.mrf.mxu0
        %288 = vdwg.mxu0
        %v289 = vmax.f32 %v284, 0.0
        %v290 = vpack.c.bf16 %v289, %v289
        %v291 = vld [vmem:[%s3] sm:$0xf]
        %v292 = vld [vmem:[%s3 + $0x4] sm:$0xf]
        %v293 = vld [vmem:[%s3 + $0x8] sm:$0xf]
        %v294 = vld [vmem:[%s3 + $0xc] sm:$0xf]
        %v295 = vld [vmem:[%s3 + $0x10] sm:$0xf]
        %v296 = vld [vmem:[%s3 + $0x14] sm:$0xf]
        %v297 = vld [vmem:[%s3 + $0x18] sm:$0xf]
        %v298 = vld [vmem:[%s3 + $0x1c] sm:$0xf]
        %v299 = vld [vmem:[%s3 + $0x20] sm:$0xf]
        %v300 = vld [vmem:[%s3 + $0x24] sm:$0xf]
        %v301 = vld [vmem:[%s3 + $0x28] sm:$0xf]
        %v302 = vld [vmem:[%s3 + $0x2c] sm:$0xf]
        %v303 = vld [vmem:[%s3 + $0x30] sm:$0xf]
        %v304 = vld [vmem:[%s3 + $0x34] sm:$0xf]
        %v305 = vld [vmem:[%s3 + $0x38] sm:$0xf]
        %v306 = vld [vmem:[%s3 + $0x3c] sm:$0xf]
        %v307 = vld [vmem:[%s4] sm:$0x1]
        %v309 = vlaneseq
        %v310 = vshrl.u32 %v309, 7
        %v311 = vsub.s32 0, %v310
        %v312 = vrot.slane %v307, %v311
        %v330 = vunpack.c.l.b16 %v291
        %v331 = vunpack.c.l.b16 %v292
        %v332 = vunpack.c.l.b16 %v293
        %v333 = vunpack.c.l.b16 %v294
        %v334 = vunpack.c.l.b16 %v295
        %v335 = vunpack.c.l.b16 %v296
        %v336 = vunpack.c.l.b16 %v297
        %v337 = vunpack.c.l.b16 %v298
        %v338 = vunpack.c.l.b16 %v299
        %v339 = vunpack.c.l.b16 %v300
        %v340 = vunpack.c.l.b16 %v301
        %v341 = vunpack.c.l.b16 %v302
        %v342 = vunpack.c.l.b16 %v303
        %v343 = vunpack.c.l.b16 %v304
        %v344 = vunpack.c.l.b16 %v305
        %v345 = vunpack.c.l.b16 %v306
        %v346 = vpack.c.b16 %v331, %v330
        %v347 = vpack.c.b16 %v333, %v332
        %v348 = vpack.c.b16 %v335, %v334
        %v349 = vpack.c.b16 %v337, %v336
        %v350 = vpack.c.b16 %v339, %v338
        %v351 = vpack.c.b16 %v341, %v340
        %v352 = vpack.c.b16 %v343, %v342
        %v353 = vpack.c.b16 %v345, %v344
        %362 = vmatprep.subr.bf16.mxu0 0
        %363 = vmatpush1.bf16.msra.mxu0 %v353
        %364 = vmatprep.subr.bf16.mxu0 0
        %365 = vmatpush1.bf16.msra.mxu0 %v352
        %366 = vmatprep.subr.bf16.mxu0 0
        %367 = vmatpush1.bf16.msra.mxu0 %v351
        %368 = vmatprep.subr.bf16.mxu0 0
        %369 = vmatpush1.bf16.msra.mxu0 %v350
        %370 = vmatprep.subr.bf16.mxu0 0
        %371 = vmatpush1.bf16.msra.mxu0 %v349
        %372 = vmatprep.subr.bf16.mxu0 0
        %373 = vmatpush1.bf16.msra.mxu0 %v348
        %374 = vmatprep.subr.bf16.mxu0 0
        %375 = vmatpush1.bf16.msra.mxu0 %v347
        %376 = vmatprep.subr.bf16.mxu0 0
        %377 = vmatpush1.bf16.msra.mxu0 %v346
        %378 = vmatprep.subr.bf16.mxu0 0
        %379 = vmatpush2.bf16.msra.mxu0 0
        %380 = vmatprep.subr.bf16.mxu0 0
        %381 = vmatpush2.bf16.msra.mxu0 0
        %382 = vmatprep.subr.bf16.mxu0 0
        %383 = vmatpush2.bf16.msra.mxu0 0
        %384 = vmatprep.subr.bf16.mxu0 0
        %385 = vmatpush2.bf16.msra.mxu0 0
        %386 = vmatprep.subr.bf16.mxu0 0
        %387 = vmatpush2.bf16.msra.mxu0 0
        %388 = vmatprep.subr.bf16.mxu0 0
        %389 = vmatpush2.bf16.msra.mxu0 0
        %390 = vmatprep.subr.bf16.mxu0 0
        %391 = vmatpush2.bf16.msra.mxu0 0
        %392 = vmatprep.subr.bf16.mxu0 0
        %393 = vmatpush2.bf16.msra.mxu0 0
        %394 = vmatprep.mubr.bf16.mxu0 0
        %395 = vmatmul.mubr.bf16.gmra.mxu0 %v290
        %v396 = vpop.f32.mrf.mxu0
        %v397 = vadd.f32 %v312, %v396
        %v398 = vpop.f32.mrf.mxu0
        %v399 = vpop.f32.mrf.mxu0
        %v400 = vpop.f32.mrf.mxu0
        %401 = vdwg.mxu0
        %402 = vst.msk [vmem:[%s215] sm:$0xff] %vm245, %v397
        %s403 = sand.u32 %s137, 1
        %s404 = scalar_lea.sflag [#allocation3], %s403
        %s405 = sand.u32 %s137, 1
        %s406 = smul.addr %s405, 8
        %s407 = scalar_lea.vmem [#allocation2], %s406
        // Predicated region
        $region41: #{_ffn_impl.1} parent=39 // pred_check
          %p408 = pneg %p147
        $region42: #{_ffn_impl.1} parent=39 // pred_check_branch
          %410 = sbr.rel (%p408) target = $region44
        $region43: #{_ffn_impl.1} parent=39 // pred_region
          %s412 = ssub.s32 128, 128
          %413 = vsyncadd %s404, %s412
          %s414 = smul.addr %s19, 128
          %s415 = scalar_lea.hbm %s5, %s414
          %s417 = sshll.u32 %s407, 4
          %s418 = int_to_ptr.vmem [resolvable:$true] %s417
          %420 = dma.vmem_to_hbm [thread:$0]  %s418, 128, %s415, %s404
        $region44: #{_ffn_impl.1} parent=39 // pred_fallthru
          _
      $region40: #{_ffn_impl.1} parent=5 // pred_fallthru
        _
      %p421 = scmp.le.s32.totalorder 2, %s14
      // Predicated region
      $region45: #{_ffn_impl.1} parent=5 // pred_check
        %p422 = pneg %p421
      $region46: #{_ffn_impl.1} parent=5 // pred_check_branch
        %424 = sbr.rel (%p422) target = $region48
      $region47: #{_ffn_impl.1} parent=5 // pred_region
        %s425 = ssub.s32 %s14, 2
        // Predicated region
        $region49: #{_ffn_impl.1} parent=47 // pred_check
          %p426 = pneg %p153
        $region50: #{_ffn_impl.1} parent=47 // pred_check_branch
          %428 = sbr.rel (%p426) target = $region52
        $region51: #{_ffn_impl.1} parent=47 // pred_region
          %s429 = sand.u32 %s138, 1
          %s430 = scalar_lea.sflag [#allocation3], %s429
          %s431 = sand.u32 %s138, 1
          %s432 = smul.addr %s431, 8
          %s433 = scalar_lea.vmem [#allocation2], %s432
          %434 = dma.done %s430, 128
        $region52: #{_ffn_impl.1} parent=47 // pred_fallthru
          _
      $region48: #{_ffn_impl.1} parent=5 // pred_fallthru
        _
    $region6: #{_ffn_impl.1} parent=1 // loop_footer
      %s18 = sadd.s32 1, %s14
    $region7: #{_ffn_impl.1} parent=1 // loop_footer_branch
      %13 = sbr.rel target = $region3
    $region8: #{_ffn_impl.1} parent=1 // loop_exit
      _
    %435 = vsyncpa [#allocation3], 1
    %s436 = scalar_lea.sflag [#allocation3], 1
    %437 = vsyncpa %s436, 1

</llo_original>
